<compile_context>
chip_gen: v7x
topology: tpu7x:2x2x1
jax: 0.10.0
libtpu: 0.0.40
codegen_flags: <defaults>
</compile_context>

<pallas_src>
import functools

import jax
import jax.numpy as jnp
from jax.experimental import pallas as pl
from jax.experimental.pallas import tpu as pltpu


def _bce_weighted_kernel(x_ref, y_ref, out_ref, *,
                         weight0, weight1, block_rows, acc_rows, bpc,
                         total_blocks, total_rows,
                         needs_tail_mask, has_pad_blocks):
    """Per-tile weighted-BCE contribution, folded into a small resident accumulator."""
    c = pl.program_id(0)          # chunk (parallel axis; v7x TC sharding)
    i = pl.program_id(1)          # reduction axis over row-blocks
    g = c * bpc + i               # logical global block index (>= total_blocks => filler)

    @pl.when(i == 0)
    def _():
        out_ref[...] = jnp.zeros_like(out_ref)

    x = x_ref[...].astype(jnp.float32)       # free if already f32; per-tile upcast otherwise
    lab = y_ref[...] != 0                    # works for any integer label width
    # One log per element: select its argument and the (pre-negated) weight.
    arg = jnp.where(lab, x, 1.0 - x)
    w = jnp.where(lab, jnp.float32(-weight1), jnp.float32(-weight0))

    def accumulate(a):
        loss = w * jnp.log(jnp.maximum(a, 1e-6))
        # Collapse to (acc_rows, 128): sublane-aligned VPU adds, lane-dense store.
        out_ref[...] += jnp.sum(loss.reshape(-1, acc_rows, 128), axis=0)

    is_tail = g == total_blocks - 1          # only the last real block can overhang
    is_real = g < total_blocks               # clamped filler blocks contribute nothing

    if needs_tail_mask:
        not_tail = jnp.logical_not(is_tail)
        fast_cond = jnp.logical_and(is_real, not_tail) if has_pad_blocks else not_tail

        @pl.when(fast_cond)                  # unmasked fast path for interior blocks
        def _():
            accumulate(arg)

        @pl.when(is_tail)                    # the tail block is always a real block
        def _():
            # Mask the log ARGUMENT (not the result): overhang VMEM may hold NaNs.
            row_ids = jax.lax.broadcasted_iota(jnp.int32, (block_rows, 128), 0)
            valid = (g * block_rows + row_ids) < total_rows
            accumulate(jnp.where(valid, arg, 1.0))   # log(1) = 0 -> overhang adds 0
    else:
        if has_pad_blocks:
            @pl.when(is_real)
            def _():
                accumulate(arg)
        else:
            accumulate(arg)


def _default_num_chunks():
    """TensorCores per chip: 2 on v7x, 1 on v5e/v6e.  Defensive query, clamp to [1, 2]."""
    try:
        info = pltpu.get_tpu_info()
        for name in ("num_cores", "core_count", "num_tensorcores",
                     "tensorcore_count", "num_tensor_cores"):
            v = getattr(info, name, None)
            if v:
                return max(1, min(2, int(v)))
    except Exception:
        pass
    return 2   # safe default: extra chunk is nearly free with the tiny accumulator


def bce_loss_with_weight(x, label, weight0, weight1, *,
                         block_rows=4096, num_chunks=None):
    """Weighted BCE loss (mean over all elements) of a b x 1 x h x w tensor pair."""
    n = x.size
    xf = x.reshape(-1)        # native dtype; no conversion pass in the wrapper
    lf = label.reshape(-1)    # native int dtype; kernel does `!= 0`

    # Lane-dense (rows, 128) slab, rows a multiple of 8.  For typical b*h*w the
    # pad is 0 (free reshape, no HBM copy); zero pads (x=0, label=0) add exactly 0.
    align = 8 * 128
    pad = (-n) % align
    if pad:
        xf = jnp.pad(xf, (0, pad))
        lf = jnp.pad(lf, (0, pad))
    rows = (n + pad) // 128
    xf = xf.reshape(rows, 128)
    lf = lf.reshape(rows, 128)

    block_rows = int(min(block_rows, rows))
    if block_rows < rows:
        block_rows = max(8, (block_rows // 8) * 8)   # sub-block must respect (8,128) tiling
    total_blocks = pl.cdiv(rows, block_rows)

    if num_chunks is None:
        num_chunks = _default_num_chunks()
    num_chunks = max(1, min(int(num_chunks), 2, total_blocks))
    bpc = pl.cdiv(total_blocks, num_chunks)
    has_pad_blocks = (num_chunks * bpc != total_blocks)   # odd split -> clamped filler block
    needs_tail_mask = (rows % block_rows != 0)            # last block overhangs the slab
    acc_rows = 64 if block_rows % 64 == 0 else 8          # small resident accumulator

    if has_pad_blocks:
        last = total_blocks - 1
        in_idx = lambda c, i: (jnp.minimum(c * bpc + i, last), 0)   # keep both v7x TCs busy
    else:
        in_idx = lambda c, i: (c * bpc + i, 0)

    kernel = functools.partial(
        _bce_weighted_kernel,
        weight0=float(weight0), weight1=float(weight1),
        block_rows=block_rows, acc_rows=acc_rows, bpc=bpc,
        total_blocks=total_blocks, total_rows=rows,
        needs_tail_mask=needs_tail_mask, has_pad_blocks=has_pad_blocks)

    # TODO(synk): if a profile ever shows exposed DMA at tile boundaries, add
    # pipeline_mode=pl.Buffered(3) to the in_specs (VMEM headroom allows it on v6e/v7x).
    partial_sums = pl.pallas_call(
        kernel,
        out_shape=jax.ShapeDtypeStruct((num_chunks, acc_rows, 128), jnp.float32),
        grid_spec=pltpu.PrefetchScalarGridSpec(
            num_scalar_prefetch=0,
            grid=(num_chunks, bpc),
            in_specs=[
                pl.BlockSpec((block_rows, 128), in_idx),
                pl.BlockSpec((block_rows, 128), in_idx),
            ],
            out_specs=pl.BlockSpec((None, acc_rows, 128), lambda c, i: (c, 0, 0)),
        ),
        compiler_params=pltpu.CompilerParams(
            dimension_semantics=("parallel", "arbitrary"),
        ),
    )(xf, lf)

    # Tiny (<= 64 KiB) final reduction + mean scale, handled by XLA.
    return jnp.sum(partial_sums) / n


def _reference(x, label, w0, w1):
    lab = label.astype(jnp.float32)
    loss = -(w0 * jnp.log(jnp.clip(1.0 - x, 1e-6, 1.0)) * (1.0 - lab)
             + w1 * jnp.log(jnp.clip(x, 1e-6, 1.0)) * lab)
    return jnp.mean(loss)


if __name__ == "__main__":
    key = jax.random.PRNGKey(0)
    k1, k2 = jax.random.split(key)

    b, c, h, w = 2, 1, 16, 16          # input: b x 1 x h x w (NCHW, as in PyTorch)
    weight0, weight1 = 0.4, 1.6        # deterministic "module params"

    x = jax.random.uniform(k1, (b, c, h, w), dtype=jnp.float32)            # probabilities
    label = jax.random.bernoulli(k2, 0.5, (b, c, h, w)).astype(jnp.int32)  # torch.long analog

    out = bce_loss_with_weight(x, label, weight0, weight1)
    out = jax.block_until_ready(out)

    ref = _reference(x, label, weight0, weight1)
    assert jnp.allclose(out, ref, rtol=1e-5, atol=1e-6), (out, ref)

    print("KERNEL_OK")
</pallas_src>

<mosaic_0001>
module attributes {stable_mosaic.version = 11 : i64} {
  func.func @_bce_weighted_kernel(%arg0: i32, %arg1: i32, %arg2: memref<8x128xf32, #tpu.memory_space<vmem>>, %arg3: memref<8x128xi32, #tpu.memory_space<vmem>>, %arg4: memref<1x8x128xf32, #tpu.memory_space<vmem>>) attributes {dimension_semantics = [#tpu.dimension_semantics<parallel>, #tpu.dimension_semantics<arbitrary>], iteration_bounds = array<i64: 1, 1>, scalar_prefetch = 0 : i64, scratch_operands = 0 : i64, tpu.core_type = #tpu.core_type<tc>, window_params = [{transform_indices = @transform_0, window_bounds = array<i64: 8, 128>}, {transform_indices = @transform_1, window_bounds = array<i64: 8, 128>}, {transform_indices = @transform_2, window_bounds = array<i64: 1, 8, 128>}]} {
    %c0_i32 = arith.constant 0 : i32
    %0 = arith.cmpi eq, %arg1, %c0_i32 : i32
    %1 = arith.extui %0 : i1 to i32
    %c0_i32_0 = arith.constant 0 : i32
    %2 = arith.cmpi ne, %1, %c0_i32_0 : i32
    scf.if %2 {
      %cst_15 = arith.constant 0.000000e+00 : f32
      %25 = vector.broadcast %cst_15 : f32 to vector<8x128xf32>
      %c0_16 = arith.constant 0 : index
      %c0_17 = arith.constant 0 : index
      %c0_18 = arith.constant 0 : index
      %26 = vector.load %arg4[%c0_16, %c0_17, %c0_18] : memref<1x8x128xf32, #tpu.memory_space<vmem>>, vector<1x8x128xf32>
      %27 = vector.shape_cast %26 : vector<1x8x128xf32> to vector<8x128xf32>
      %28 = vector.shape_cast %25 : vector<8x128xf32> to vector<1x8x128xf32>
      tpu.vector_store %arg4[%c0_16, %c0_17, %c0_18], %28 {strides = array<i32>} : memref<1x8x128xf32, #tpu.memory_space<vmem>>, vector<1x8x128xf32>,
    } else {
    }
    %c0 = arith.constant 0 : index
    %c0_1 = arith.constant 0 : index
    %3 = vector.load %arg2[%c0, %c0_1] : memref<8x128xf32, #tpu.memory_space<vmem>>, vector<8x128xf32>
    %c0_2 = arith.constant 0 : index
    %c0_3 = arith.constant 0 : index
    %4 = vector.load %arg3[%c0_2, %c0_3] : memref<8x128xi32, #tpu.memory_space<vmem>>, vector<8x128xi32>
    %c0_i32_4 = arith.constant 0 : i32
    %5 = vector.broadcast %c0_i32_4 : i32 to vector<8x128xi32>
    %6 = arith.cmpi ne, %4, %5 : vector<8x128xi32>
    %cst = arith.constant 1.000000e+00 : f32
    %7 = vector.broadcast %cst : f32 to vector<8x128xf32>
    %8 = arith.subf %7, %3 : vector<8x128xf32>
    %9 = arith.select %6, %3, %8 : vector<8x128xi1>, vector<8x128xf32>
    %cst_5 = arith.constant -1.600000e+00 : f32
    %cst_6 = arith.constant -4.000000e-01 : f32
    %10 = vector.broadcast %cst_5 : f32 to vector<8x128xf32>
    %11 = vector.broadcast %cst_6 : f32 to vector<8x128xf32>
    %12 = arith.select %6, %10, %11 : vector<8x128xi1>, vector<8x128xf32>
    %cst_7 = arith.constant 9.99999997E-7 : f32
    %13 = vector.broadcast %cst_7 : f32 to vector<8x128xf32>
    %14 = arith.maximumf %9, %13 : vector<8x128xf32>
    %15 = math.log %14 : vector<8x128xf32>
    %16 = arith.mulf %12, %15 : vector<8x128xf32>
    %c0_8 = arith.constant 0 : index
    %c0_9 = arith.constant 0 : index
    %c0_10 = arith.constant 0 : index
    %17 = vector.load %arg4[%c0_8, %c0_9, %c0_10] : memref<1x8x128xf32, #tpu.memory_space<vmem>>, vector<1x8x128xf32>
    %18 = vector.shape_cast %17 : vector<1x8x128xf32> to vector<8x128xf32>
    %19 = vector.shape_cast %16 : vector<8x128xf32> to vector<1x8x128xf32>
    %cst_11 = arith.constant dense<0.000000e+00> : vector<8x128xf32>
    %20 = vector.multi_reduction <add>, %19, %cst_11 [0] : vector<1x8x128xf32> to vector<8x128xf32>
    %21 = arith.addf %18, %20 : vector<8x128xf32>
    %c0_12 = arith.constant 0 : index
    %c0_13 = arith.constant 0 : index
    %c0_14 = arith.constant 0 : index
    %22 = vector.load %arg4[%c0_12, %c0_13, %c0_14] : memref<1x8x128xf32, #tpu.memory_space<vmem>>, vector<1x8x128xf32>
    %23 = vector.shape_cast %22 : vector<1x8x128xf32> to vector<8x128xf32>
    %24 = vector.shape_cast %21 : vector<8x128xf32> to vector<1x8x128xf32>
    tpu.vector_store %arg4[%c0_12, %c0_13, %c0_14], %24 {strides = array<i32>} : memref<1x8x128xf32, #tpu.memory_space<vmem>>, vector<1x8x128xf32>,
    return
  }
  func.func @transform_0(%arg0: i32, %arg1: i32) -> (i32, i32) {
    %c1_i32 = arith.constant 1 : i32
    %0 = arith.muli %arg0, %c1_i32 : i32
    %1 = arith.addi %0, %arg1 : i32
    %c0_i32 = arith.constant 0 : i32
    %c0_i32_0 = arith.constant 0 : i32
    return %1, %c0_i32 : i32, i32
  }
  func.func @transform_1(%arg0: i32, %arg1: i32) -> (i32, i32) {
    %c1_i32 = arith.constant 1 : i32
    %0 = arith.muli %arg0, %c1_i32 : i32
    %1 = arith.addi %0, %arg1 : i32
    %c0_i32 = arith.constant 0 : i32
    %c0_i32_0 = arith.constant 0 : i32
    return %1, %c0_i32 : i32, i32
  }
  func.func @transform_2(%arg0: i32, %arg1: i32) -> (i32, i32, i32) {
    %c0_i32 = arith.constant 0 : i32
    %c0_i32_0 = arith.constant 0 : i32
    %c0_i32_1 = arith.constant 0 : i32
    return %arg0, %c0_i32, %c0_i32_0 : i32, i32, i32
  }
}

</mosaic_0001>

<llo_original>
// kernel: tpu_custom_call.1
$region0: #{tpu_custom_call.1}
  #allocation0 [shape = 'u32[]', space=smem, size = 0x4, offset = 0x4, fixed_abs, tag = 'smem constant byte address 0x4 - core index']
  #allocation1 [shape = 'u32[144,128]{1,0:T(1,128)}', space=vmem, size = 0x12000, scoped, tag = 'internal scratch']
  %s0 = inlined_call_operand.hbm [shape: f32[8,128], index: 0, kind: input, shape index: {}]
  %s1 = inlined_call_operand.hbm [shape: s32[8,128], index: 1, kind: input, shape index: {}]
  %s2 = inlined_call_operand.hbm [shape: f32[1,8,128], index: 2, kind: output, shape index: {}]
  %s3 = sld [smem:[#allocation0]]
  $region30: #{tpu_custom_call.1} parent=0
    _
  %s5 = ssub.s32 1, %s3
  %s6 = scalar_select 0, %s5, %s3
  $region1: #{tpu_custom_call.1} parent=0
    #allocation2 [shape = 'u8[4096]{0}', space=vmem, size = 0x1000, scoped, tag = 'input window, operand 0, single buffered']
    #allocation3 [shape = 's32[1]{0}', space=sflag, size = 0x4, scoped, tag = 'scoped memory for tpu_custom_call.1']
    #allocation4 [shape = 's32[1]{0}', space=sflag, size = 0x4, scoped, tag = 'scoped memory for tpu_custom_call.1']
    #allocation5 [shape = 'u8[4096]{0}', space=vmem, size = 0x1000, scoped, tag = 'input window, operand 1, single buffered']
    #allocation6 [shape = 's32[1]{0}', space=sflag, size = 0x4, scoped, tag = 'scoped memory for tpu_custom_call.1']
    #allocation7 [shape = 'u8[4096]{0}', space=vmem, size = 0x1000, scoped, tag = 'output window, operand 0, single buffered']
    %7 = vsyncpa [#allocation3], 0
    %8 = vsyncpa [#allocation6], 0
    %9 = vsyncpa [#allocation4], 0
    // Predicated region
    $region2: #{tpu_custom_call.1} parent=1 // pred_check
      _
    $region3: #{tpu_custom_call.1} parent=1 // pred_check_branch
      %11 = sbr.rel (0) target = $region5
    $region4: #{tpu_custom_call.1} parent=1 // pred_region
      %s12 = sadd.s32 0, 0
      %s14 = ssub.s32 128, 128
      %15 = vsyncadd [#allocation3], %s14
      %s16 = smul.addr %s12, 128
      %s17 = scalar_lea.hbm %s0, %s16
      %s19 = sshll.u32 [#allocation2], 4
      %s20 = int_to_ptr.vmem [resolvable:$true] %s19
      %22 = dma.hbm_to_vmem [thread:$0]  %s17, 128, %s20, [#allocation3]
    $region5: #{tpu_custom_call.1} parent=1 // pred_fallthru
      _
    // Predicated region
    $region6: #{tpu_custom_call.1} parent=1 // pred_check
      _
    $region7: #{tpu_custom_call.1} parent=1 // pred_check_branch
      %24 = sbr.rel (0) target = $region9
    $region8: #{tpu_custom_call.1} parent=1 // pred_region
      %s25 = sadd.s32 0, 0
      %s27 = ssub.s32 128, 128
      %28 = vsyncadd [#allocation6], %s27
      %s29 = smul.addr %s25, 128
      %s30 = scalar_lea.hbm %s1, %s29
      %s32 = sshll.u32 [#allocation5], 4
      %s33 = int_to_ptr.vmem [resolvable:$true] %s32
      %35 = dma.hbm_to_vmem [thread:$0]  %s30, 128, %s33, [#allocation6]
    $region9: #{tpu_custom_call.1} parent=1 // pred_fallthru
      _
    // Predicated region
    $region10: #{tpu_custom_call.1} parent=1 // pred_check
      _
    $region11: #{tpu_custom_call.1} parent=1 // pred_check_branch
      %37 = sbr.rel (0) target = $region13
    $region12: #{tpu_custom_call.1} parent=1 // pred_region
      %38 = dma.done [#allocation3], 128
    $region13: #{tpu_custom_call.1} parent=1 // pred_fallthru
      _
    // Predicated region
    $region14: #{tpu_custom_call.1} parent=1 // pred_check
      _
    $region15: #{tpu_custom_call.1} parent=1 // pred_check_branch
      %40 = sbr.rel (0) target = $region17
    $region16: #{tpu_custom_call.1} parent=1 // pred_region
      %41 = dma.done [#allocation6], 128
    $region17: #{tpu_custom_call.1} parent=1 // pred_fallthru
      _
    %s42 = sadd.s32 0, 0
    %s43 = sadd.s32 0, 0
    %p44 = scmp.eq.s32.totalorder 0, 0
    // Predicated region
    $region18: #{tpu_custom_call.1} parent=1 // pred_check
      %p45 = pneg %p44
    $region19: #{tpu_custom_call.1} parent=1 // pred_check_branch
      %47 = sbr.rel (%p45) target = $region21
    $region20: #{tpu_custom_call.1} parent=1 // pred_region
      %48 = vst [vmem:[#allocation7] sm:$0xff] 0.0
    $region21: #{tpu_custom_call.1} parent=1 // pred_fallthru
      _
    %v49 = vld [vmem:[#allocation2] sm:$0xff]
    %v50 = vld [vmem:[#allocation5] sm:$0xff]
    %vm51 = vcmp.ne.s32.totalorder %v50, 0
    %v52 = vsub.f32 1.0, %v49
    %v53 = vsel %vm51, %v49, %v52
    %v54 = vsel %vm51, -1.6, -0.4
    %v55 = vmax.f32 %v53, 1e-06
    %v56 = vlog2.pop %v55
    %v57 = vmul.f32 %v56, 0.6931472
    %v58 = vmul.f32 %v54, %v57
    %v59 = vld [vmem:[#allocation7] sm:$0xff]
    %v60 = vadd.f32 %v58, 0.0
    %v61 = vadd.f32 %v59, %v60
    %62 = vst [vmem:[#allocation7] sm:$0xff] %v61
    // Predicated region
    $region22: #{tpu_custom_call.1} parent=1 // pred_check
      _
    $region23: #{tpu_custom_call.1} parent=1 // pred_check_branch
      %64 = sbr.rel (0) target = $region25
    $region24: #{tpu_custom_call.1} parent=1 // pred_region
      %s66 = ssub.s32 128, 128
      %67 = vsyncadd [#allocation4], %s66
      %s69 = sshll.u32 [#allocation7], 4
      %s70 = int_to_ptr.vmem [resolvable:$true] %s69
      %72 = dma.vmem_to_hbm [thread:$0]  %s70, 128, %s2, [#allocation4]
    $region25: #{tpu_custom_call.1} parent=1 // pred_fallthru
      _
    // Predicated region
    $region26: #{tpu_custom_call.1} parent=1 // pred_check
      _
    $region27: #{tpu_custom_call.1} parent=1 // pred_check_branch
      %74 = sbr.rel (0) target = $region29
    $region28: #{tpu_custom_call.1} parent=1 // pred_region
      %75 = dma.done [#allocation4], 128
    $region29: #{tpu_custom_call.1} parent=1 // pred_fallthru
      _
    %76 = vsyncpa [#allocation3], 1
    %77 = vsyncpa [#allocation6], 1
    %78 = vsyncpa [#allocation4], 1

</llo_original>
